<compile_context>
chip_gen: v7x
topology: tpu7x:2x2x1
jax: 0.10.0
libtpu: 0.0.40
codegen_flags: <defaults>
</compile_context>

<pallas_src>
import math

import jax
import jax.numpy as jnp
from jax.experimental import pallas as pl
from jax.experimental.pallas import tpu as pltpu


# ---------------------------------------------------------------------------
# Fused 2-layer RGCN kernel.  Grid = (layer, basis); basis is the reduction.
# ---------------------------------------------------------------------------
def _rgcn2_fused_kernel(x_ref, a_ref, basis_ref, root_ref, bias_ref, invdeg_ref,
                        o_ref, xcur_ref, acc_ref, base_ref):
    l = pl.program_id(0)            # layer index (0 = conv1, 1 = conv2)
    b = pl.program_id(1)            # basis index (reduction axis)
    nb = pl.num_programs(1)

    @pl.when((l == 0) & (b == 0))
    def _():
        xcur_ref[...] = x_ref[...]                     # seed layer-1 input

    @pl.when(b == 0)
    def _():
        acc_ref[...] = jnp.zeros_like(acc_ref)
        # Root/bias term computed up-front so it overlaps later basis DMAs
        # instead of sitting serially in the epilogue.
        base_ref[...] = (jnp.dot(xcur_ref[...], root_ref[...],
                                 preferred_element_type=jnp.float32)
                         + bias_ref[...])

    # Message path via the basis identity:  acc += A~_b @ (X @ basis_b)
    h = jnp.dot(xcur_ref[...], basis_ref[...],
                preferred_element_type=jnp.float32)
    acc_ref[...] += jnp.dot(a_ref[...], h.astype(jnp.bfloat16),
                            preferred_element_type=jnp.float32)

    @pl.when(b == nb - 1)
    def _():
        out = acc_ref[...] * invdeg_ref[...] + base_ref[...]   # mean aggr + root + bias

        @pl.when(l == 0)
        def _():
            # ReLU between conv1 and conv2; result stays resident in VMEM.
            xcur_ref[...] = jnp.maximum(out, 0.0).astype(xcur_ref.dtype)

        @pl.when(l == pl.num_programs(0) - 1)
        def _():
            o_ref[...] = out.astype(o_ref.dtype)


# ---------------------------------------------------------------------------
# Glue: dense per-relation adjacency + in-degree (matches PyG aggr='mean')
# ---------------------------------------------------------------------------
def build_dense_graph(edge_index, edge_type, edge_norm, num_nodes, num_relations):
    # TODO(synk): for realistic graph sizes replace the dense A[R,N,N] build with
    # a CSR / scalar-prefetch gather formulation (O(E) instead of O(R*N^2)).
    src, dst = edge_index[0], edge_index[1]            # flow: source_to_target
    adj = jnp.zeros((num_relations, num_nodes, num_nodes), jnp.float32)
    adj = adj.at[edge_type, dst, src].add(edge_norm.astype(jnp.float32))
    deg = jnp.zeros((num_nodes,), jnp.float32).at[dst].add(1.0)
    inv_deg = jnp.where(deg > 0, 1.0 / jnp.maximum(deg, 1.0), 0.0)
    return adj, inv_deg


def _round_up(v, m):
    return (v + m - 1) // m * m


# ---------------------------------------------------------------------------
# Full RGCN forward (embedding lookup -> fused [conv1 -> relu -> conv2])
# ---------------------------------------------------------------------------
def rgcn_forward(params, entity, edge_index, edge_type, edge_norm, num_relations):
    x = params["emb"][entity]                          # [N, D] embedding gather (glue)
    N, D = x.shape
    NP = _round_up(N, 8)
    DP = _round_up(D, 128)

    adj, inv_deg = build_dense_graph(edge_index, edge_type, edge_norm,
                                     N, num_relations)

    def layer_tensors(conv):
        # Basis-combined adjacency  A~_b = sum_r att[r, b] * A_r
        a_t = jnp.einsum("rb,rij->bij", conv["att"].astype(jnp.float32), adj)
        a_t = jnp.pad(a_t, ((0, 0), (0, NP - N), (0, NP - N)))
        basis_p = jnp.pad(conv["basis"], ((0, 0), (0, DP - D), (0, DP - D)))
        root_p = jnp.pad(conv["root"], ((0, DP - D), (0, DP - D)))
        bias_p = jnp.pad(conv["bias"], (0, DP - D)).reshape(1, DP)
        return a_t, basis_p, root_p, bias_p

    a1, b1, r1, bi1 = layer_tensors(params["conv1"])
    a2, b2, r2, bi2 = layer_tensors(params["conv2"])

    a_all = jnp.stack([a1, a2]).astype(jnp.bfloat16)         # [2, nb, NP, NP]
    basis_all = jnp.stack([b1, b2]).astype(jnp.bfloat16)     # [2, nb, DP, DP]
    root_all = jnp.stack([r1, r2]).astype(jnp.bfloat16)      # [2, DP, DP]
    bias_all = jnp.stack([bi1, bi2]).astype(jnp.float32)     # [2, 1, DP]
    x_p = jnp.pad(x, ((0, NP - N), (0, DP - D))).astype(jnp.bfloat16)
    invdeg_p = jnp.pad(inv_deg, (0, NP - N)).reshape(NP, 1).astype(jnp.float32)

    # TODO(synk): F.dropout between conv1 and conv2 is stochastic in training
    # mode; evaluated here as identity (eval mode).
    nb = basis_all.shape[1]
    out = pl.pallas_call(
        _rgcn2_fused_kernel,
        out_shape=jax.ShapeDtypeStruct((NP, DP), jnp.float32),
        grid_spec=pltpu.PrefetchScalarGridSpec(
            num_scalar_prefetch=0,
            grid=(2, nb),                                          # (layer, basis)
            in_specs=[
                pl.BlockSpec((NP, DP), lambda l, b: (0, 0)),                    # x0
                pl.BlockSpec((None, None, NP, NP), lambda l, b: (l, b, 0, 0)),  # A~
                pl.BlockSpec((None, None, DP, DP), lambda l, b: (l, b, 0, 0)),  # basis
                pl.BlockSpec((None, DP, DP), lambda l, b: (l, 0, 0)),           # root
                pl.BlockSpec((None, 1, DP), lambda l, b: (l, 0, 0)),            # bias
                pl.BlockSpec((NP, 1), lambda l, b: (0, 0)),                     # 1/deg
            ],
            out_specs=pl.BlockSpec((NP, DP), lambda l, b: (0, 0)),
            scratch_shapes=[
                pltpu.VMEM((NP, DP), jnp.bfloat16),   # xcur  (current layer input)
                pltpu.VMEM((NP, DP), jnp.float32),    # acc   (message accumulator)
                pltpu.VMEM((NP, DP), jnp.float32),    # base  (X @ root + bias)
            ],
        ),
        compiler_params=pltpu.CompilerParams(
            dimension_semantics=("arbitrary", "arbitrary")),
    )(x_p, a_all, basis_all, root_all, bias_all, invdeg_p)

    return out[:N, :D]


# ---------------------------------------------------------------------------
# Pure-JAX reference (mirrors RGCNConv.message / aggregate(mean) / update)
# ---------------------------------------------------------------------------
def rgcn_conv_ref(x, edge_index, edge_type, edge_norm, att, basis, root, bias):
    R, nb = att.shape
    I, O = basis.shape[1], basis.shape[2]
    W = (att @ basis.reshape(nb, I * O)).reshape(R, I, O)
    src, dst = edge_index[0], edge_index[1]
    msgs = jnp.einsum("ei,eio->eo", x[src], W[edge_type],
                      precision=jax.lax.Precision.HIGHEST)
    msgs = msgs * edge_norm[:, None]
    N = x.shape[0]
    agg_sum = jnp.zeros((N, O), jnp.float32).at[dst].add(msgs)
    cnt = jnp.zeros((N,), jnp.float32).at[dst].add(1.0)
    agg = agg_sum / jnp.maximum(cnt, 1.0)[:, None]
    return agg + jnp.dot(x, root, precision=jax.lax.Precision.HIGHEST) + bias


def rgcn_forward_ref(params, entity, edge_index, edge_type, edge_norm):
    x = params["emb"][entity]
    c1, c2 = params["conv1"], params["conv2"]
    x = jnp.maximum(rgcn_conv_ref(x, edge_index, edge_type, edge_norm,
                                  c1["att"], c1["basis"], c1["root"], c1["bias"]), 0.0)
    x = rgcn_conv_ref(x, edge_index, edge_type, edge_norm,
                      c2["att"], c2["basis"], c2["root"], c2["bias"])
    return x


# ---------------------------------------------------------------------------
# Deterministic parameter init (shapes from RGCN.__init__ / RGCNConv.__init__)
# ---------------------------------------------------------------------------
def init_rgcn_params(key, num_entities, num_relations, num_bases, dim=100):
    R = num_relations * 2
    bound = 1.0 / math.sqrt(num_bases * dim)
    k_emb, k1, k2 = jax.random.split(key, 3)

    def conv_params(k):
        ka, kb, kc, kd = jax.random.split(k, 4)
        return dict(
            basis=jax.random.uniform(ka, (num_bases, dim, dim), jnp.float32,
                                     -bound, bound),
            att=jax.random.uniform(kb, (R, num_bases), jnp.float32, -bound, bound),
            root=jax.random.uniform(kc, (dim, dim), jnp.float32, -bound, bound),
            bias=jax.random.uniform(kd, (dim,), jnp.float32, -bound, bound),
        )

    return dict(
        emb=jax.random.normal(k_emb, (num_entities, dim), jnp.float32),  # nn.Embedding ~ N(0,1)
        conv1=conv_params(k1),
        conv2=conv_params(k2),
    )


if __name__ == "__main__":
    key = jax.random.PRNGKey(0)
    num_entities, num_relations, num_bases, dropout = 24, 3, 4, 0.2
    R = num_relations * 2          # RGCN uses num_relations * 2 relation types
    N, E = 16, 40                  # nodes in subgraph, edges

    kp, ke1, ke2, ke3, ke4 = jax.random.split(key, 5)
    params = init_rgcn_params(kp, num_entities, num_relations, num_bases)

    entity = jnp.arange(N, dtype=jnp.int32)                         # node -> entity id
    src = jax.random.randint(ke1, (E,), 0, N, dtype=jnp.int32)
    dst = jax.random.randint(ke2, (E,), 0, N, dtype=jnp.int32)
    edge_index = jnp.stack([src, dst], axis=0)                      # [2, E]
    edge_type = jax.random.randint(ke3, (E,), 0, R, dtype=jnp.int32)
    edge_norm = jax.random.uniform(ke4, (E,), jnp.float32, 0.5, 1.5)

    out = rgcn_forward(params, entity, edge_index, edge_type, edge_norm, R)
    out = jax.block_until_ready(out)

    ref = jax.block_until_ready(
        rgcn_forward_ref(params, entity, edge_index, edge_type, edge_norm))

    assert out.shape == (N, 100) and out.dtype == jnp.float32
    # bf16 operands + f32 accumulation vs f32(HIGHEST) reference: allow bf16-level
    # relative deviation accumulated over two layers.
    assert jnp.allclose(out, ref, atol=2e-2, rtol=2e-2), (
        f"max abs err {jnp.max(jnp.abs(out - ref))}")
    print("KERNEL_OK")
</pallas_src>

<mosaic_0001>
module attributes {stable_mosaic.version = 11 : i64} {
  func.func @_rgcn2_fused_kernel(%arg0: i32, %arg1: i32, %arg2: memref<16x128xbf16, #tpu.memory_space<vmem>>, %arg3: memref<1x1x16x16xbf16, #tpu.memory_space<vmem>>, %arg4: memref<1x1x128x128xbf16, #tpu.memory_space<vmem>>, %arg5: memref<1x128x128xbf16, #tpu.memory_space<vmem>>, %arg6: memref<1x1x128xf32, #tpu.memory_space<vmem>>, %arg7: memref<16x1xf32, #tpu.memory_space<vmem>>, %arg8: memref<16x128xf32, #tpu.memory_space<vmem>>, %arg9: memref<16x128xbf16, #tpu.memory_space<vmem>>, %arg10: memref<16x128xf32, #tpu.memory_space<vmem>>, %arg11: memref<16x128xf32, #tpu.memory_space<vmem>>) attributes {dimension_semantics = [#tpu.dimension_semantics<arbitrary>, #tpu.dimension_semantics<arbitrary>], iteration_bounds = array<i64: 2, 4>, scalar_prefetch = 0 : i64, scratch_operands = 3 : i64, tpu.core_type = #tpu.core_type<tc>, window_params = [{pipeline_mode = #tpu.pipeline_mode<synchronous>, transform_indices = @transform_0, window_bounds = array<i64: 16, 128>}, {transform_indices = @transform_1, window_bounds = array<i64: 1, 1, 16, 16>}, {transform_indices = @transform_2, window_bounds = array<i64: 1, 1, 128, 128>}, {transform_indices = @transform_3, window_bounds = array<i64: 1, 128, 128>}, {transform_indices = @transform_4, window_bounds = array<i64: 1, 1, 128>}, {pipeline_mode = #tpu.pipeline_mode<synchronous>, transform_indices = @transform_5, window_bounds = array<i64: 16, 1>}, {pipeline_mode = #tpu.pipeline_mode<synchronous>, transform_indices = @transform_6, window_bounds = array<i64: 16, 128>}]} {
    %c0_i32 = arith.constant 0 : i32
    %0 = arith.cmpi eq, %arg0, %c0_i32 : i32
    %c0_i32_0 = arith.constant 0 : i32
    %1 = arith.cmpi eq, %arg1, %c0_i32_0 : i32
    %2 = arith.andi %0, %1 : i1
    %3 = arith.extui %2 : i1 to i32
    %c0_i32_1 = arith.constant 0 : i32
    %4 = arith.cmpi ne, %3, %c0_i32_1 : i32
    scf.if %4 {
      %c0_19 = arith.constant 0 : index
      %c0_20 = arith.constant 0 : index
      %22 = vector.load %arg2[%c0_19, %c0_20] : memref<16x128xbf16, #tpu.memory_space<vmem>>, vector<16x128xbf16>
      %c0_21 = arith.constant 0 : index
      %c0_22 = arith.constant 0 : index
      %23 = vector.load %arg9[%c0_21, %c0_22] : memref<16x128xbf16, #tpu.memory_space<vmem>>, vector<16x128xbf16>
      tpu.vector_store %arg9[%c0_21, %c0_22], %22 {strides = array<i32>} : memref<16x128xbf16, #tpu.memory_space<vmem>>, vector<16x128xbf16>,
    } else {
    }
    %c0_i32_2 = arith.constant 0 : i32
    %5 = arith.cmpi eq, %arg1, %c0_i32_2 : i32
    %6 = arith.extui %5 : i1 to i32
    %c0_i32_3 = arith.constant 0 : i32
    %7 = arith.cmpi ne, %6, %c0_i32_3 : i32
    scf.if %7 {
      %cst_19 = arith.constant 0.000000e+00 : f32
      %22 = vector.broadcast %cst_19 : f32 to vector<16x128xf32>
      %c0_20 = arith.constant 0 : index
      %c0_21 = arith.constant 0 : index
      %23 = vector.load %arg10[%c0_20, %c0_21] : memref<16x128xf32, #tpu.memory_space<vmem>>, vector<16x128xf32>
      tpu.vector_store %arg10[%c0_20, %c0_21], %22 {strides = array<i32>} : memref<16x128xf32, #tpu.memory_space<vmem>>, vector<16x128xf32>,
      %c0_22 = arith.constant 0 : index
      %c0_23 = arith.constant 0 : index
      %24 = vector.load %arg9[%c0_22, %c0_23] : memref<16x128xbf16, #tpu.memory_space<vmem>>, vector<16x128xbf16>
      %c0_24 = arith.constant 0 : index
      %c0_25 = arith.constant 0 : index
      %c0_26 = arith.constant 0 : index
      %25 = vector.load %arg5[%c0_24, %c0_25, %c0_26] : memref<1x128x128xbf16, #tpu.memory_space<vmem>>, vector<1x128x128xbf16>
      %26 = vector.shape_cast %25 : vector<1x128x128xbf16> to vector<128x128xbf16>
      %cst_27 = arith.constant dense<0.000000e+00> : vector<16x128xf32>
      %27 = tpu.matmul %24, %26, %cst_27 {dimension_numbers = #tpu.dot_dimension_numbers<[1], [0], [0], [1], [0, 0, 1, 1], [], []>} : vector<16x128xbf16>, vector<128x128xbf16>, vector<16x128xf32> -> vector<16x128xf32>
      %c0_28 = arith.constant 0 : index
      %c0_29 = arith.constant 0 : index
      %c0_30 = arith.constant 0 : index
      %28 = vector.load %arg6[%c0_28, %c0_29, %c0_30] : memref<1x1x128xf32, #tpu.memory_space<vmem>>, vector<1x1x128xf32>
      %29 = vector.shape_cast %28 : vector<1x1x128xf32> to vector<1x128xf32>
      %30 = vector.broadcast %29 : vector<1x128xf32> to vector<16x128xf32>
      %31 = arith.addf %27, %30 : vector<16x128xf32>
      %c0_31 = arith.constant 0 : index
      %c0_32 = arith.constant 0 : index
      %32 = vector.load %arg11[%c0_31, %c0_32] : memref<16x128xf32, #tpu.memory_space<vmem>>, vector<16x128xf32>
      tpu.vector_store %arg11[%c0_31, %c0_32], %31 {strides = array<i32>} : memref<16x128xf32, #tpu.memory_space<vmem>>, vector<16x128xf32>,
    } else {
    }
    %c0 = arith.constant 0 : index
    %c0_4 = arith.constant 0 : index
    %8 = vector.load %arg9[%c0, %c0_4] : memref<16x128xbf16, #tpu.memory_space<vmem>>, vector<16x128xbf16>
    %c0_5 = arith.constant 0 : index
    %c0_6 = arith.constant 0 : index
    %c0_7 = arith.constant 0 : index
    %c0_8 = arith.constant 0 : index
    %9 = vector.load %arg4[%c0_5, %c0_6, %c0_7, %c0_8] : memref<1x1x128x128xbf16, #tpu.memory_space<vmem>>, vector<1x1x128x128xbf16>
    %10 = vector.shape_cast %9 : vector<1x1x128x128xbf16> to vector<128x128xbf16>
    %cst = arith.constant dense<0.000000e+00> : vector<16x128xf32>
    %11 = tpu.matmul %8, %10, %cst {dimension_numbers = #tpu.dot_dimension_numbers<[1], [0], [0], [1], [0, 0, 1, 1], [], []>} : vector<16x128xbf16>, vector<128x128xbf16>, vector<16x128xf32> -> vector<16x128xf32>
    %c0_9 = arith.constant 0 : index
    %c0_10 = arith.constant 0 : index
    %12 = vector.load %arg10[%c0_9, %c0_10] : memref<16x128xf32, #tpu.memory_space<vmem>>, vector<16x128xf32>
    %c0_11 = arith.constant 0 : index
    %c0_12 = arith.constant 0 : index
    %c0_13 = arith.constant 0 : index
    %c0_14 = arith.constant 0 : index
    %13 = vector.load %arg3[%c0_11, %c0_12, %c0_13, %c0_14] : memref<1x1x16x16xbf16, #tpu.memory_space<vmem>>, vector<1x1x16x16xbf16>
    %14 = vector.shape_cast %13 : vector<1x1x16x16xbf16> to vector<16x16xbf16>
    %15 = arith.truncf %11 : vector<16x128xf32> to vector<16x128xbf16>
    %cst_15 = arith.constant dense<0.000000e+00> : vector<16x128xf32>
    %16 = tpu.matmul %14, %15, %cst_15 {dimension_numbers = #tpu.dot_dimension_numbers<[1], [0], [0], [1], [0, 0, 1, 1], [], []>} : vector<16x16xbf16>, vector<16x128xbf16>, vector<16x128xf32> -> vector<16x128xf32>
    %17 = arith.addf %12, %16 : vector<16x128xf32>
    %c0_16 = arith.constant 0 : index
    %c0_17 = arith.constant 0 : index
    %18 = vector.load %arg10[%c0_16, %c0_17] : memref<16x128xf32, #tpu.memory_space<vmem>>, vector<16x128xf32>
    tpu.vector_store %arg10[%c0_16, %c0_17], %17 {strides = array<i32>} : memref<16x128xf32, #tpu.memory_space<vmem>>, vector<16x128xf32>,
    %c3_i32 = arith.constant 3 : i32
    %19 = arith.cmpi eq, %arg1, %c3_i32 : i32
    %20 = arith.extui %19 : i1 to i32
    %c0_i32_18 = arith.constant 0 : i32
    %21 = arith.cmpi ne, %20, %c0_i32_18 : i32
    scf.if %21 {
      %c0_19 = arith.constant 0 : index
      %c0_20 = arith.constant 0 : index
      %22 = vector.load %arg10[%c0_19, %c0_20] : memref<16x128xf32, #tpu.memory_space<vmem>>, vector<16x128xf32>
      %c0_21 = arith.constant 0 : index
      %c0_22 = arith.constant 0 : index
      %23 = vector.load %arg7[%c0_21, %c0_22] : memref<16x1xf32, #tpu.memory_space<vmem>>, vector<16x1xf32>
      %24 = vector.broadcast %23 : vector<16x1xf32> to vector<16x128xf32>
      %25 = arith.mulf %22, %24 : vector<16x128xf32>
      %c0_23 = arith.constant 0 : index
      %c0_24 = arith.constant 0 : index
      %26 = vector.load %arg11[%c0_23, %c0_24] : memref<16x128xf32, #tpu.memory_space<vmem>>, vector<16x128xf32>
      %27 = arith.addf %25, %26 : vector<16x128xf32>
      %c0_i32_25 = arith.constant 0 : i32
      %28 = arith.cmpi eq, %arg0, %c0_i32_25 : i32
      %29 = arith.extui %28 : i1 to i32
      %c0_i32_26 = arith.constant 0 : i32
      %30 = arith.cmpi ne, %29, %c0_i32_26 : i32
      scf.if %30 {
        %cst_28 = arith.constant 0.000000e+00 : f32
        %34 = vector.broadcast %cst_28 : f32 to vector<16x128xf32>
        %35 = arith.maximumf %27, %34 : vector<16x128xf32>
        %36 = arith.truncf %35 : vector<16x128xf32> to vector<16x128xbf16>
        %c0_29 = arith.constant 0 : index
        %c0_30 = arith.constant 0 : index
        %37 = vector.load %arg9[%c0_29, %c0_30] : memref<16x128xbf16, #tpu.memory_space<vmem>>, vector<16x128xbf16>
        tpu.vector_store %arg9[%c0_29, %c0_30], %36 {strides = array<i32>} : memref<16x128xbf16, #tpu.memory_space<vmem>>, vector<16x128xbf16>,
      } else {
      }
      %c1_i32 = arith.constant 1 : i32
      %31 = arith.cmpi eq, %arg0, %c1_i32 : i32
      %32 = arith.extui %31 : i1 to i32
      %c0_i32_27 = arith.constant 0 : i32
      %33 = arith.cmpi ne, %32, %c0_i32_27 : i32
      scf.if %33 {
        %c0_28 = arith.constant 0 : index
        %c0_29 = arith.constant 0 : index
        %34 = vector.load %arg8[%c0_28, %c0_29] : memref<16x128xf32, #tpu.memory_space<vmem>>, vector<16x128xf32>
        tpu.vector_store %arg8[%c0_28, %c0_29], %27 {strides = array<i32>} : memref<16x128xf32, #tpu.memory_space<vmem>>, vector<16x128xf32>,
      } else {
      }
    } else {
    }
    return
  }
  func.func @transform_0(%arg0: i32, %arg1: i32) -> (i32, i32) {
    %c0_i32 = arith.constant 0 : i32
    %c0_i32_0 = arith.constant 0 : i32
    %c0_i32_1 = arith.constant 0 : i32
    return %c0_i32, %c0_i32_0 : i32, i32
  }
  func.func @transform_1(%arg0: i32, %arg1: i32) -> (i32, i32, i32, i32) {
    %c0_i32 = arith.constant 0 : i32
    %c0_i32_0 = arith.constant 0 : i32
    %c0_i32_1 = arith.constant 0 : i32
    return %arg0, %arg1, %c0_i32, %c0_i32_0 : i32, i32, i32, i32
  }
  func.func @transform_2(%arg0: i32, %arg1: i32) -> (i32, i32, i32, i32) {
    %c0_i32 = arith.constant 0 : i32
    %c0_i32_0 = arith.constant 0 : i32
    %c0_i32_1 = arith.constant 0 : i32
    return %arg0, %arg1, %c0_i32, %c0_i32_0 : i32, i32, i32, i32
  }
  func.func @transform_3(%arg0: i32, %arg1: i32) -> (i32, i32, i32) {
    %c0_i32 = arith.constant 0 : i32
    %c0_i32_0 = arith.constant 0 : i32
    %c0_i32_1 = arith.constant 0 : i32
    return %arg0, %c0_i32, %c0_i32_0 : i32, i32, i32
  }
  func.func @transform_4(%arg0: i32, %arg1: i32) -> (i32, i32, i32) {
    %c0_i32 = arith.constant 0 : i32
    %c0_i32_0 = arith.constant 0 : i32
    %c0_i32_1 = arith.constant 0 : i32
    return %arg0, %c0_i32, %c0_i32_0 : i32, i32, i32
  }
  func.func @transform_5(%arg0: i32, %arg1: i32) -> (i32, i32) {
    %c0_i32 = arith.constant 0 : i32
    %c0_i32_0 = arith.constant 0 : i32
    %c0_i32_1 = arith.constant 0 : i32
    return %c0_i32, %c0_i32_0 : i32, i32
  }
  func.func @transform_6(%arg0: i32, %arg1: i32) -> (i32, i32) {
    %c0_i32 = arith.constant 0 : i32
    %c0_i32_0 = arith.constant 0 : i32
    %c0_i32_1 = arith.constant 0 : i32
    return %c0_i32, %c0_i32_0 : i32, i32
  }
}

</mosaic_0001>

<llo_original>
// kernel: tpu_custom_call.1
$region0: #{tpu_custom_call.1}
  #allocation0 [shape = 'u32[]', space=smem, size = 0x4, offset = 0x4, fixed_abs, tag = 'smem constant byte address 0x4 - core index']
  #allocation1 [shape = 'u32[144,128]{1,0:T(1,128)}', space=vmem, size = 0x12000, scoped, tag = 'internal scratch']
  #allocation2 [shape = 'bf16[16,128]{1,0:T(16,128)(2,1)}', space=vmem, size = 0x1000, scoped, tag = 'scratch operand']
  #allocation3 [shape = 'f32[16,128]{1,0:T(8,128)}', space=vmem, size = 0x2000, scoped, tag = 'scratch operand']
  #allocation4 [shape = 'f32[16,128]{1,0:T(8,128)}', space=vmem, size = 0x2000, scoped, tag = 'scratch operand']
  %s0 = inlined_call_operand.vmem [shape: bf16[16,128], index: 0, kind: input, shape index: {}]
  %s1 = inlined_call_operand.hbm [shape: bf16[2,4,16,16], index: 1, kind: input, shape index: {}]
  %s2 = inlined_call_operand.hbm [shape: bf16[2,4,128,128], index: 2, kind: input, shape index: {}]
  %s3 = inlined_call_operand.hbm [shape: bf16[2,128,128], index: 3, kind: input, shape index: {}]
  %s4 = inlined_call_operand.vmem [shape: f32[2,1,128], index: 4, kind: input, shape index: {}]
  %s5 = inlined_call_operand.vmem [shape: f32[16,1], index: 5, kind: input, shape index: {}]
  %s6 = inlined_call_operand.hbm [shape: f32[16,128], index: 6, kind: output, shape index: {}]
  %s7 = sld [smem:[#allocation0]]
  $region89: #{tpu_custom_call.1} parent=0
    _
  %s9 = ssub.s32 1, %s7
  %s10 = scalar_select 0, %s9, %s7
  $region1: #{tpu_custom_call.1} parent=0
    #allocation5 [shape = 'u8[8192]{0}', space=vmem, size = 0x2000, scoped, tag = 'input window, operand 1']
    #allocation6 [shape = 's32[2]{0}', space=sflag, size = 0x8, scoped, tag = 'scoped memory for tpu_custom_call.1']
    #allocation7 [shape = 's32[2]{0}', space=sflag, size = 0x8, scoped, tag = 'scoped memory for tpu_custom_call.1']
    #allocation8 [shape = 'u8[65536]{0}', space=vmem, size = 0x10000, scoped, tag = 'input window, operand 2']
    #allocation9 [shape = 's32[2]{0}', space=sflag, size = 0x8, scoped, tag = 'scoped memory for tpu_custom_call.1']
    #allocation10 [shape = 'u8[65536]{0}', space=vmem, size = 0x10000, scoped, tag = 'input window, operand 3']
    #allocation11 [shape = 'u8[8192]{0}', space=vmem, size = 0x2000, scoped, tag = 'output window, operand 0, single buffered']
    %11 = vsyncpa [#allocation6], 0
    %s12 = scalar_lea.sflag [#allocation6], 1
    %13 = vsyncpa %s12, 0
    %14 = vsyncpa [#allocation9], 0
    %s15 = scalar_lea.sflag [#allocation9], 1
    %16 = vsyncpa %s15, 0
    %17 = vsyncpa [#allocation7], 0
    loop: start=0, step=1, limit=10
    $region2: #{tpu_custom_call.1} parent=1 // loop_pre_header
      _
    $region3: #{tpu_custom_call.1} parent=1 // loop_header
      %s19 = sphi 0, %s23
      %p20 = scmp.ge.s32.totalorder %s19, 10
      %s26 = sphi 0, %s38
      %s27 = sphi 0, %s34
      %s28 = sphi 0, %s26
      %s29 = sphi 0, %s27
      %s30 = sphi 0, %s28
      %s31 = sphi 0, %s29
      %s39 = sphi 0, %s39
      %s41 = sphi 0, %s39
      %s42 = sphi 0, %s41
      %s56 = sphi 0, %s42
      %s64 = sphi 0, %s66
      %s67 = sphi 0, %s64
      %s68 = sphi 0, %s67
      %s84 = sphi 0, %s68
      %s92 = sphi 0, %s94
      %s95 = sphi 0, %s92
      %s96 = sphi 0, %s95
      %s112 = sphi 0, %s96
      %s118 = sphi 0, %s120
      %s121 = sphi 0, %s118
      %s122 = sphi 0, %s121
      %s138 = sphi 0, %s122
      %s144 = sphi 0, %s146
      %s147 = sphi 0, %s144
      %s148 = sphi 0, %s147
      %s164 = sphi 0, %s148
      %s168 = sphi 0, %s168
      %s170 = sphi 0, %s168
      %s171 = sphi 0, %s170
      %s185 = sphi 0, %s171
      %s189 = sphi 0, %s189
      %s191 = sphi 0, %s189
      %s192 = sphi 0, %s191
      %s206 = sphi 0, %s192
    $region4: #{tpu_custom_call.1} parent=1 // loop_header_branch
      %22 = sbr.rel (%p20) target = $region8
    $region5: #{tpu_custom_call.1} parent=1 // loop_body
      %s24 = ssub.s32 %s19, 1
      %s25 = ssub.s32 %s19, 2
      %s32 = sadd.s32 1, %s27
      %p33 = scmp.ge.s32.totalorder %s32, 4
      %s34 = scalar_select %p33, 0, %s32
      %s35 = sadd.s32 1, %s26
      %s36 = scalar_select %p33, %s35, %s26
      %p37 = scmp.ge.s32.totalorder %s36, 2
      %s38 = scalar_select %p37, 0, %s36
      %s40 = sadd.s32 %s39, 1
      %p43 = scmp.eq.s32.totalorder %s19, 7
      %p44 = scmp.ne.s32.totalorder %s39, %s41
      %p45 = scmp.eq.s32.totalorder %s19, 0
      %p46 = por %p44, %p45
      %p47 = scmp.ne.s32.totalorder %s39, %s41
      %p48 = scmp.eq.s32.totalorder %s24, 7
      %p49 = por %p47, %p48
      %p50 = scmp.ne.s32.totalorder %s41, %s42
      %p51 = scmp.eq.s32.totalorder %s24, 0
      %p52 = por %p50, %p51
      %p53 = scmp.ne.s32.totalorder %s41, %s42
      %p54 = scmp.eq.s32.totalorder %s25, 7
      %p55 = por %p53, %p54
      %p57 = scmp.ne.s32.totalorder %s42, %s56
      %p58 = scmp.eq.s32.totalorder %s25, 0
      %p59 = por %p57, %p58
      %s60 = ssub.s32 %s26, %s38
      %s61 = ssub.s32 %s27, %s34
      %s62 = sor.u32 %s60, %s61
      %p63 = scmp.eq.s32.totalorder %s62, 0
      %s65 = sadd.s32 %s64, 1
      %s66 = scalar_select %p63, %s64, %s65
      %p69 = pneg %p63
      %p70 = scmp.eq.s32.totalorder %s19, 7
      %p71 = por %p69, %p70
      %p72 = scmp.ne.s32.totalorder %s64, %s67
      %p73 = scmp.eq.s32.totalorder %s19, 0
      %p74 = por %p72, %p73
      %p75 = scmp.ne.s32.totalorder %s64, %s67
      %p76 = scmp.eq.s32.totalorder %s24, 7
      %p77 = por %p75, %p76
      %p78 = scmp.ne.s32.totalorder %s67, %s68
      %p79 = scmp.eq.s32.totalorder %s24, 0
      %p80 = por %p78, %p79
      %p81 = scmp.ne.s32.totalorder %s67, %s68
      %p82 = scmp.eq.s32.totalorder %s25, 7
      %p83 = por %p81, %p82
      %p85 = scmp.ne.s32.totalorder %s68, %s84
      %p86 = scmp.eq.s32.totalorder %s25, 0
      %p87 = por %p85, %p86
      %s88 = ssub.s32 %s26, %s38
      %s89 = ssub.s32 %s27, %s34
      %s90 = sor.u32 %s88, %s89
      %p91 = scmp.eq.s32.totalorder %s90, 0
      %s93 = sadd.s32 %s92, 1
      %s94 = scalar_select %p91, %s92, %s93
      %p97 = pneg %p91
      %p98 = scmp.eq.s32.totalorder %s19, 7
      %p99 = por %p97, %p98
      %p100 = scmp.ne.s32.totalorder %s92, %s95
      %p101 = scmp.eq.s32.totalorder %s19, 0
      %p102 = por %p100, %p101
      %p103 = scmp.ne.s32.totalorder %s92, %s95
      %p104 = scmp.eq.s32.totalorder %s24, 7
      %p105 = por %p103, %p104
      %p106 = scmp.ne.s32.totalorder %s95, %s96
      %p107 = scmp.eq.s32.totalorder %s24, 0
      %p108 = por %p106, %p107
      %p109 = scmp.ne.s32.totalorder %s95, %s96
      %p110 = scmp.eq.s32.totalorder %s25, 7
      %p111 = por %p109, %p110
      %p113 = scmp.ne.s32.totalorder %s96, %s112
      %p114 = scmp.eq.s32.totalorder %s25, 0
      %p115 = por %p113, %p114
      %s116 = ssub.s32 %s26, %s38
      %p117 = scmp.eq.s32.totalorder %s116, 0
      %s119 = sadd.s32 %s118, 1
      %s120 = scalar_select %p117, %s118, %s119
      %p123 = pneg %p117
      %p124 = scmp.eq.s32.totalorder %s19, 7
      %p125 = por %p123, %p124
      %p126 = scmp.ne.s32.totalorder %s118, %s121
      %p127 = scmp.eq.s32.totalorder %s19, 0
      %p128 = por %p126, %p127
      %p129 = scmp.ne.s32.totalorder %s118, %s121
      %p130 = scmp.eq.s32.totalorder %s24, 7
      %p131 = por %p129, %p130
      %p132 = scmp.ne.s32.totalorder %s121, %s122
      %p133 = scmp.eq.s32.totalorder %s24, 0
      %p134 = por %p132, %p133
      %p135 = scmp.ne.s32.totalorder %s121, %s122
      %p136 = scmp.eq.s32.totalorder %s25, 7
      %p137 = por %p135, %p136
      %p139 = scmp.ne.s32.totalorder %s122, %s138
      %p140 = scmp.eq.s32.totalorder %s25, 0
      %p141 = por %p139, %p140
      %s142 = ssub.s32 %s26, %s38
      %p143 = scmp.eq.s32.totalorder %s142, 0
      %s145 = sadd.s32 %s144, 1
      %s146 = scalar_select %p143, %s144, %s145
      %p149 = pneg %p143
      %p150 = scmp.eq.s32.totalorder %s19, 7
      %p151 = por %p149, %p150
      %p152 = scmp.ne.s32.totalorder %s144, %s147
      %p153 = scmp.eq.s32.totalorder %s19, 0
      %p154 = por %p152, %p153
      %p155 = scmp.ne.s32.totalorder %s144, %s147
      %p156 = scmp.eq.s32.totalorder %s24, 7
      %p157 = por %p155, %p156
      %p158 = scmp.ne.s32.totalorder %s147, %s148
      %p159 = scmp.eq.s32.totalorder %s24, 0
      %p160 = por %p158, %p159
      %p161 = scmp.ne.s32.totalorder %s147, %s148
      %p162 = scmp.eq.s32.totalorder %s25, 7
      %p163 = por %p161, %p162
      %p165 = scmp.ne.s32.totalorder %s148, %s164
      %p166 = scmp.eq.s32.totalorder %s25, 0
      %p167 = por %p165, %p166
      %s169 = sadd.s32 %s168, 1
      %p172 = scmp.eq.s32.totalorder %s19, 7
      %p173 = scmp.ne.s32.totalorder %s168, %s170
      %p174 = scmp.eq.s32.totalorder %s19, 0
      %p175 = por %p173, %p174
      %p176 = scmp.ne.s32.totalorder %s168, %s170
      %p177 = scmp.eq.s32.totalorder %s24, 7
      %p178 = por %p176, %p177
      %p179 = scmp.ne.s32.totalorder %s170, %s171
      %p180 = scmp.eq.s32.totalorder %s24, 0
      %p181 = por %p179, %p180
      %p182 = scmp.ne.s32.totalorder %s170, %s171
      %p183 = scmp.eq.s32.totalorder %s25, 7
      %p184 = por %p182, %p183
      %p186 = scmp.ne.s32.totalorder %s171, %s185
      %p187 = scmp.eq.s32.totalorder %s25, 0
      %p188 = por %p186, %p187
      %s190 = sadd.s32 %s189, 1
      %p193 = scmp.eq.s32.totalorder %s19, 7
      %p194 = scmp.ne.s32.totalorder %s189, %s191
      %p195 = scmp.eq.s32.totalorder %s19, 0
      %p196 = por %p194, %p195
      %p197 = scmp.ne.s32.totalorder %s189, %s191
      %p198 = scmp.eq.s32.totalorder %s24, 7
      %p199 = por %p197, %p198
      %p200 = scmp.ne.s32.totalorder %s191, %s192
      %p201 = scmp.eq.s32.totalorder %s24, 0
      %p202 = por %p200, %p201
      %p203 = scmp.ne.s32.totalorder %s191, %s192
      %p204 = scmp.eq.s32.totalorder %s25, 7
      %p205 = por %p203, %p204
      %p207 = scmp.ne.s32.totalorder %s192, %s206
      %p208 = scmp.eq.s32.totalorder %s25, 0
      %p209 = por %p207, %p208
      %p210 = scmp.le.s32.totalorder 1, %s19
      %p211 = scmp.lt.s32.totalorder %s19, 9
      %p212 = pnand %p210, %p211
      %p213 = pneg %p212
      // Predicated region
      $region9: #{tpu_custom_call.1} parent=5 // pred_check
        _
      $region10: #{tpu_custom_call.1} parent=5 // pred_check_branch
        %215 = sbr.rel (%p212) target = $region12
      $region11: #{tpu_custom_call.1} parent=5 // pred_region
        %s216 = ssub.s32 %s19, 1
        // Predicated region
        $region13: #{tpu_custom_call.1} parent=11 // pred_check
          %p217 = pneg %p52
        $region14: #{tpu_custom_call.1} parent=11 // pred_check_branch
          %219 = sbr.rel (%p217) target = $region16
        $region15: #{tpu_custom_call.1} parent=11 // pred_region
          _
        $region16: #{tpu_custom_call.1} parent=11 // pred_fallthru
          _
        // Predicated region
        $region17: #{tpu_custom_call.1} parent=11 // pred_check
          %p220 = pneg %p181
        $region18: #{tpu_custom_call.1} parent=11 // pred_check_branch
          %222 = sbr.rel (%p220) target = $region20
        $region19: #{tpu_custom_call.1} parent=11 // pred_region
          _
        $region20: #{tpu_custom_call.1} parent=11 // pred_fallthru
          _
      $region12: #{tpu_custom_call.1} parent=5 // pred_fallthru
        _
      %p223 = scmp.lt.s32.totalorder %s19, 8
      // Predicated region
      $region21: #{tpu_custom_call.1} parent=5 // pred_check
        %p224 = pneg %p223
      $region22: #{tpu_custom_call.1} parent=5 // pred_check_branch
        %226 = sbr.rel (%p224) target = $region24
      $region23: #{tpu_custom_call.1} parent=5 // pred_region
        // Predicated region
        $region25: #{tpu_custom_call.1} parent=23 // pred_check
          %p227 = pneg %p74
        $region26: #{tpu_custom_call.1} parent=23 // pred_check_branch
          %229 = sbr.rel (%p227) target = $region28
        $region27: #{tpu_custom_call.1} parent=23 // pred_region
          %s230 = sand.u32 %s64, 1
          %s231 = scalar_lea.sflag [#allocation6], %s230
          %s232 = sand.u32 %s64, 1
          %s233 = smul.addr %s232, 8
          %s234 = scalar_lea.vmem [#allocation5], %s233
          %s236 = ssub.s32 128, 128
          %237 = vsyncadd %s231, %s236
          %s238 = smul.addr %s27, 2
          %s239 = smul.addr %s26, 8
          %s240 = sadd.s32 %s238, %s239
          %s241 = smul.addr %s240, 64
          %s242 = scalar_lea.hbm %s1, %s241
          %s243 = sshll.u32 %s234, 4
          %s244 = int_to_ptr.vmem [resolvable:$true] %s243
          %249 = dma.hbm_to_vmem [thread:$0]  %s242, 128, %s244, %s231, 64, 64, 4
        $region28: #{tpu_custom_call.1} parent=23 // pred_fallthru
          _
        // Predicated region
        $region29: #{tpu_custom_call.1} parent=23 // pred_check
          %p250 = pneg %p102
        $region30: #{tpu_custom_call.1} parent=23 // pred_check_branch
          %252 = sbr.rel (%p250) target = $region32
        $region31: #{tpu_custom_call.1} parent=23 // pred_region
          %s253 = sand.u32 %s19, 1
          %s254 = scalar_lea.sflag [#allocation9], %s253
          %s255 = sand.u32 %s92, 1
          %s256 = smul.addr %s255, 64
          %s257 = scalar_lea.vmem [#allocation8], %s256
          %s259 = ssub.s32 1024, 1024
          %260 = vsyncadd %s254, %s259
          %s261 = smul.addr %s27, 16
          %s262 = smul.addr %s26, 64
          %s263 = sadd.s32 %s261, %s262
          %s264 = smul.addr %s263, 64
          %s265 = scalar_lea.hbm %s2, %s264
          %s266 = sshll.u32 %s257, 4
          %s267 = int_to_ptr.vmem [resolvable:$true] %s266
          %272 = dma.hbm_to_vmem [thread:$0]  %s265, 1024, %s267, %s254, 64, 64, 4
        $region32: #{tpu_custom_call.1} parent=23 // pred_fallthru
          _
        // Predicated region
        $region33: #{tpu_custom_call.1} parent=23 // pred_check
          %p273 = pneg %p128
        $region34: #{tpu_custom_call.1} parent=23 // pred_check_branch
          %275 = sbr.rel (%p273) target = $region36
        $region35: #{tpu_custom_call.1} parent=23 // pred_region
          %s276 = sand.u32 %s19, 1
          %s277 = scalar_lea.sflag [#allocation9], %s276
          %s278 = sand.u32 %s118, 1
          %s279 = smul.addr %s278, 64
          %s280 = scalar_lea.vmem [#allocation10], %s279
          %s282 = ssub.s32 1024, 1024
          %283 = vsyncadd %s277, %s282
          %s284 = smul.addr %s26, 16
          %s285 = smul.addr %s284, 64
          %s286 = scalar_lea.hbm %s3, %s285
          %s287 = sshll.u32 %s280, 4
          %s288 = int_to_ptr.vmem [resolvable:$true] %s287
          %293 = dma.hbm_to_vmem [thread:$0]  %s286, 1024, %s288, %s277, 64, 64, 4
        $region36: #{tpu_custom_call.1} parent=23 // pred_fallthru
          _
        // Predicated region
        $region37: #{tpu_custom_call.1} parent=23 // pred_check
          %p294 = pneg %p154
        $region38: #{tpu_custom_call.1} parent=23 // pred_check_branch
          %296 = sbr.rel (%p294) target = $region40
        $region39: #{tpu_custom_call.1} parent=23 // pred_region
          %p297 = scmp.lt.s32.totalorder %s26, 1
          %s298 = scalar_select %p297, %s26, 1
          %s299 = scalar_lea.vmem %s4, %s298
        $region40: #{tpu_custom_call.1} parent=23 // pred_fallthru
          _
      $region24: #{tpu_custom_call.1} parent=5 // pred_fallthru
        _
      %p300 = scmp.le.s32.totalorder 1, %s19
      %p301 = scmp.lt.s32.totalorder %s19, 9
      %p302 = pnand %p300, %p301
      %p303 = pneg %p302
      // Predicated region
      $region41: #{tpu_custom_call.1} parent=5 // pred_check
        _
      $region42: #{tpu_custom_call.1} parent=5 // pred_check_branch
        %305 = sbr.rel (%p302) target = $region44
      $region43: #{tpu_custom_call.1} parent=5 // pred_region
        %s306 = ssub.s32 %s19, 1
        %s307 = sand.u32 %s67, 1
        %s308 = scalar_lea.sflag [#allocation6], %s307
        %s309 = sand.u32 %s67, 1
        %s310 = smul.addr %s309, 8
        %s311 = scalar_lea.vmem [#allocation5], %s310
        // Predicated region
        $region45: #{tpu_custom_call.1} parent=43 // pred_check
          %p312 = pneg %p80
        $region46: #{tpu_custom_call.1} parent=43 // pred_check_branch
          %314 = sbr.rel (%p312) target = $region48
        $region47: #{tpu_custom_call.1} parent=43 // pred_region
          %315 = dma.done %s308, 128
        $region48: #{tpu_custom_call.1} parent=43 // pred_fallthru
          _
        %s316 = sand.u32 %s24, 1
        %s317 = scalar_lea.sflag [#allocation9], %s316
        %s318 = sand.u32 %s95, 1
        %s319 = smul.addr %s318, 64
        %s320 = scalar_lea.vmem [#allocation8], %s319
        // Predicated region
        $region49: #{tpu_custom_call.1} parent=43 // pred_check
          %p321 = pneg %p108
        $region50: #{tpu_custom_call.1} parent=43 // pred_check_branch
          %323 = sbr.rel (%p321) target = $region52
        $region51: #{tpu_custom_call.1} parent=43 // pred_region
          %324 = dma.done %s317, 1024
        $region52: #{tpu_custom_call.1} parent=43 // pred_fallthru
          _
        %s325 = sand.u32 %s24, 1
        %s326 = scalar_lea.sflag [#allocation9], %s325
        %s327 = sand.u32 %s121, 1
        %s328 = smul.addr %s327, 64
        %s329 = scalar_lea.vmem [#allocation10], %s328
        // Predicated region
        $region53: #{tpu_custom_call.1} parent=43 // pred_check
          %p330 = pneg %p134
        $region54: #{tpu_custom_call.1} parent=43 // pred_check_branch
          %332 = sbr.rel (%p330) target = $region56
        $region55: #{tpu_custom_call.1} parent=43 // pred_region
          %333 = dma.done %s326, 1024
        $region56: #{tpu_custom_call.1} parent=43 // pred_fallthru
          _
        %p334 = pneg %p52
        %p335 = pneg %p49
        %s336 = sand.u32 %s67, 1
        %s337 = scalar_lea.sflag [#allocation6], %s336
        %s338 = sand.u32 %s67, 1
        %s339 = smul.addr %s338, 8
        %s340 = scalar_lea.vmem [#allocation5], %s339
        %p341 = pneg %p80
        %p342 = pneg %p77
        %s343 = sand.u32 %s24, 1
        %s344 = scalar_lea.sflag [#allocation9], %s343
        %s345 = sand.u32 %s95, 1
        %s346 = smul.addr %s345, 64
        %s347 = scalar_lea.vmem [#allocation8], %s346
        %p348 = pneg %p108
        %p349 = pneg %p105
        %s350 = sand.u32 %s24, 1
        %s351 = scalar_lea.sflag [#allocation9], %s350
        %s352 = sand.u32 %s121, 1
        %s353 = smul.addr %s352, 64
        %s354 = scalar_lea.vmem [#allocation10], %s353
        %p355 = pneg %p134
        %p356 = pneg %p131
        %p357 = scmp.lt.s32.totalorder %s28, 1
        %s358 = scalar_select %p357, %s28, 1
        %s359 = scalar_lea.vmem %s4, %s358
        %p360 = pneg %p160
        %p361 = pneg %p157
        %p362 = pneg %p181
        %p363 = pneg %p178
        %p364 = pneg %p202
        %p365 = pneg %p199
        %p366 = scmp.lt.s32.totalorder %s28, 1
        %s367 = scalar_select %p366, %s28, 1
        %s368 = scalar_lea.vmem %s4, %s367
        %p370 = scmp.eq.s32.totalorder %s28, 0
        %p371 = scmp.eq.s32.totalorder %s29, 0
        %p372 = pnand %p370, %p371
        %p373 = pneg %p372
        // Predicated region
        $region57: #{tpu_custom_call.1} parent=43 // pred_check
          _
        $region58: #{tpu_custom_call.1} parent=43 // pred_check_branch
          %375 = sbr.rel (%p372) target = $region60
        $region59: #{tpu_custom_call.1} parent=43 // pred_region
          %v376 = vld [vmem:[%s0] sm:$0xf]
          %v377 = vld [vmem:[%s0 + $0x4] sm:$0xf]
          %v380 = vunpack.c.l.b16 %v376
          %v381 = vunpack.c.l.b16 %v377
          %v382 = vpack.c.b16 %v381, %v380
          %384 = vst [vmem:[#allocation2] sm:$0xff] %v382
        $region60: #{tpu_custom_call.1} parent=43 // pred_fallthru
          _
        // Predicated region
        $region61: #{tpu_custom_call.1} parent=43 // pred_check
          %p385 = pneg %p371
        $region62: #{tpu_custom_call.1} parent=43 // pred_check_branch
          %387 = sbr.rel (%p385) target = $region64
        $region63: #{tpu_custom_call.1} parent=43 // pred_region
          %388 = vst [vmem:[#allocation3] sm:$0xff] 0.0
          %389 = vst [vmem:[#allocation3 + $0x8] sm:$0xff] 0.0
          %v390 = vld [vmem:[#allocation2] sm:$0xff]
          %v391 = vld [vmem:[%s329] sm:$0xf]
          %v392 = vld [vmem:[%s329 + $0x4] sm:$0xf]
          %v393 = vld [vmem:[%s329 + $0x8] sm:$0xf]
          %v394 = vld [vmem:[%s329 + $0xc] sm:$0xf]
          %v395 = vld [vmem:[%s329 + $0x10] sm:$0xf]
          %v396 = vld [vmem:[%s329 + $0x14] sm:$0xf]
          %v397 = vld [vmem:[%s329 + $0x18] sm:$0xf]
          %v398 = vld [vmem:[%s329 + $0x1c] sm:$0xf]
          %v399 = vld [vmem:[%s329 + $0x20] sm:$0xf]
          %v400 = vld [vmem:[%s329 + $0x24] sm:$0xf]
          %v401 = vld [vmem:[%s329 + $0x28] sm:$0xf]
          %v402 = vld [vmem:[%s329 + $0x2c] sm:$0xf]
          %v403 = vld [vmem:[%s329 + $0x30] sm:$0xf]
          %v404 = vld [vmem:[%s329 + $0x34] sm:$0xf]
          %v405 = vld [vmem:[%s329 + $0x38] sm:$0xf]
          %v406 = vld [vmem:[%s329 + $0x3c] sm:$0xf]
          %v407 = vld [vmem:[%s368] sm:$0x1]
          %v409 = vlaneseq
          %v410 = vshrl.u32 %v409, 7
          %v411 = vsub.s32 0, %v410
          %v412 = vrot.slane %v407, %v411
          %v430 = vunpack.c.l.b16 %v391
          %v431 = vunpack.c.l.b16 %v392
          %v432 = vunpack.c.l.b16 %v393
          %v433 = vunpack.c.l.b16 %v394
          %v434 = vunpack.c.l.b16 %v395
          %v435 = vunpack.c.l.b16 %v396
          %v436 = vunpack.c.l.b16 %v397
          %v437 = vunpack.c.l.b16 %v398
          %v438 = vunpack.c.l.b16 %v399
          %v439 = vunpack.c.l.b16 %v400
          %v440 = vunpack.c.l.b16 %v401
          %v441 = vunpack.c.l.b16 %v402
          %v442 = vunpack.c.l.b16 %v403
          %v443 = vunpack.c.l.b16 %v404
          %v444 = vunpack.c.l.b16 %v405
          %v445 = vunpack.c.l.b16 %v406
          %v446 = vpack.c.b16 %v431, %v430
          %v447 = vpack.c.b16 %v433, %v432
          %v448 = vpack.c.b16 %v435, %v434
          %v449 = vpack.c.b16 %v437, %v436
          %v450 = vpack.c.b16 %v439, %v438
          %v451 = vpack.c.b16 %v441, %v440
          %v452 = vpack.c.b16 %v443, %v442
          %v453 = vpack.c.b16 %v445, %v444
          %462 = vmatprep.subr.bf16.mxu0 0
          %463 = vmatpush1.bf16.msra.mxu0 %v446
          %464 = vmatprep.subr.bf16.mxu0 0
          %465 = vmatpush1.bf16.msra.mxu0 %v447
          %466 = vmatprep.subr.bf16.mxu0 0
          %467 = vmatpush1.bf16.msra.mxu0 %v448
          %468 = vmatprep.subr.bf16.mxu0 0
          %469 = vmatpush1.bf16.msra.mxu0 %v449
          %470 = vmatprep.subr.bf16.mxu0 0
          %471 = vmatpush1.bf16.msra.mxu0 %v450
          %472 = vmatprep.subr.bf16.mxu0 0
          %473 = vmatpush1.bf16.msra.mxu0 %v451
          %474 = vmatprep.subr.bf16.mxu0 0
          %475 = vmatpush1.bf16.msra.mxu0 %v452
          %476 = vmatprep.subr.bf16.mxu0 0
          %477 = vmatpush1.bf16.msra.mxu0 %v453
          %478 = vmatprep.subr.bf16.mxu0 0
          %479 = vmatpush1.bf16.msra.mxu0 0
          %480 = vmatprep.subr.bf16.mxu0 0
          %481 = vmatpush1.bf16.msra.mxu0 0
          %482 = vmatprep.subr.bf16.mxu0 0
          %483 = vmatpush1.bf16.msra.mxu0 0
          %484 = vmatprep.subr.bf16.mxu0 0
          %485 = vmatpush1.bf16.msra.mxu0 0
          %486 = vmatprep.subr.bf16.mxu0 0
          %487 = vmatpush1.bf16.msra.mxu0 0
          %488 = vmatprep.subr.bf16.mxu0 0
          %489 = vmatpush1.bf16.msra.mxu0 0
          %490 = vmatprep.subr.bf16.mxu0 0
          %491 = vmatpush1.bf16.msra.mxu0 0
          %492 = vmatprep.subr.bf16.mxu0 0
          %493 = vmatpush1.bf16.msra.mxu0 0
          %494 = vmatprep.mubr.bf16.mxu0 0
          %495 = vmatmul.mubr.bf16.gmra.mrb[0].mxu0 %v390
          %v496 = vpop.f32.mrb[0].mxu0
          %v497 = vadd.f32 %v412, %v496
          %v498 = vpop.f32.mrb[0].mxu0
          %v499 = vpop.f32.mrb[0].mxu0
          %v500 = vadd.f32 %v412, %v499
          %v501 = vpop.f32.mrb[0].mxu0
          %502 = vdwg.mxu0
          %503 = vst [vmem:[#allocation4] sm:$0xff] %v497
          %504 = vst [vmem:[#allocation4 + $0x8] sm:$0xff] %v500
        $region64: #{tpu_custom_call.1} parent=43 // pred_fallthru
          _
        %v505 = vld [vmem:[#allocation2] sm:$0xff]
        %v506 = vld [vmem:[%s320] sm:$0xf]
        %v507 = vld [vmem:[%s320 + $0x4] sm:$0xf]
        %v508 = vld [vmem:[%s320 + $0x8] sm:$0xf]
        %v509 = vld [vmem:[%s320 + $0xc] sm:$0xf]
        %v510 = vld [vmem:[%s320 + $0x10] sm:$0xf]
        %v511 = vld [vmem:[%s320 + $0x14] sm:$0xf]
        %v512 = vld [vmem:[%s320 + $0x18] sm:$0xf]
        %v513 = vld [vmem:[%s320 + $0x1c] sm:$0xf]
        %v514 = vld [vmem:[%s320 + $0x20] sm:$0xf]
        %v515 = vld [vmem:[%s320 + $0x24] sm:$0xf]
        %v516 = vld [vmem:[%s320 + $0x28] sm:$0xf]
        %v517 = vld [vmem:[%s320 + $0x2c] sm:$0xf]
        %v518 = vld [vmem:[%s320 + $0x30] sm:$0xf]
        %v519 = vld [vmem:[%s320 + $0x34] sm:$0xf]
        %v520 = vld [vmem:[%s320 + $0x38] sm:$0xf]
        %v521 = vld [vmem:[%s320 + $0x3c] sm:$0xf]
        %v538 = vunpack.c.l.b16 %v506
        %v539 = vunpack.c.l.b16 %v507
        %v540 = vunpack.c.l.b16 %v508
        %v541 = vunpack.c.l.b16 %v509
        %v542 = vunpack.c.l.b16 %v510
        %v543 = vunpack.c.l.b16 %v511
        %v544 = vunpack.c.l.b16 %v512
        %v545 = vunpack.c.l.b16 %v513
        %v546 = vunpack.c.l.b16 %v514
        %v547 = vunpack.c.l.b16 %v515
        %v548 = vunpack.c.l.b16 %v516
        %v549 = vunpack.c.l.b16 %v517
        %v550 = vunpack.c.l.b16 %v518
        %v551 = vunpack.c.l.b16 %v519
        %v552 = vunpack.c.l.b16 %v520
        %v553 = vunpack.c.l.b16 %v521
        %v554 = vpack.c.b16 %v539, %v538
        %v555 = vpack.c.b16 %v541, %v540
        %v556 = vpack.c.b16 %v543, %v542
        %v557 = vpack.c.b16 %v545, %v544
        %v558 = vpack.c.b16 %v547, %v546
        %v559 = vpack.c.b16 %v549, %v548
        %v560 = vpack.c.b16 %v551, %v550
        %v561 = vpack.c.b16 %v553, %v552
        %570 = vmatprep.subr.bf16.mxu0 0
        %571 = vmatpush1.bf16.msra.mxu0 %v554
        %572 = vmatprep.subr.bf16.mxu0 0
        %573 = vmatpush1.bf16.msra.mxu0 %v555
        %574 = vmatprep.subr.bf16.mxu0 0
        %575 = vmatpush1.bf16.msra.mxu0 %v556
        %576 = vmatprep.subr.bf16.mxu0 0
        %577 = vmatpush1.bf16.msra.mxu0 %v557
        %578 = vmatprep.subr.bf16.mxu0 0
        %579 = vmatpush1.bf16.msra.mxu0 %v558
        %580 = vmatprep.subr.bf16.mxu0 0
        %581 = vmatpush1.bf16.msra.mxu0 %v559
        %582 = vmatprep.subr.bf16.mxu0 0
        %583 = vmatpush1.bf16.msra.mxu0 %v560
        %584 = vmatprep.subr.bf16.mxu0 0
        %585 = vmatpush1.bf16.msra.mxu0 %v561
        %586 = vmatprep.subr.bf16.mxu0 0
        %587 = vmatpush1.bf16.msra.mxu0 0
        %588 = vmatprep.subr.bf16.mxu0 0
        %589 = vmatpush1.bf16.msra.mxu0 0
        %590 = vmatprep.subr.bf16.mxu0 0
        %591 = vmatpush1.bf16.msra.mxu0 0
        %592 = vmatprep.subr.bf16.mxu0 0
        %593 = vmatpush1.bf16.msra.mxu0 0
        %594 = vmatprep.subr.bf16.mxu0 0
        %595 = vmatpush1.bf16.msra.mxu0 0
        %596 = vmatprep.subr.bf16.mxu0 0
        %597 = vmatpush1.bf16.msra.mxu0 0
        %598 = vmatprep.subr.bf16.mxu0 0
        %599 = vmatpush1.bf16.msra.mxu0 0
        %600 = vmatprep.subr.bf16.mxu0 0
        %601 = vmatpush1.bf16.msra.mxu0 0
        %602 = vmatprep.mubr.bf16.mxu0 0
        %603 = vmatmul.mubr.bf16.gmra.mrb[0].mxu0 %v505
        %v604 = vpop.f32.mrb[0].mxu0
        %v605 = vadd.f32 0.0, %v604
        %v606 = vpop.f32.mrb[0].mxu0
        %v607 = vpop.f32.mrb[0].mxu0
        %v608 = vadd.f32 0.0, %v607
        %v609 = vpop.f32.mrb[0].mxu0
        %610 = vdwg.mxu0
        %v611 = vld [vmem:[#allocation3] sm:$0xff]
        %v612 = vld [vmem:[#allocation3 + $0x8] sm:$0xff]
        %v613 = vld [vmem:[%s311] sm:$0xf]
        %v614 = vld [vmem:[%s311 + $0x4] sm:$0xf]
        %v615 = vpack.c.bf16 %v608, %v605
        %v618 = vunpack.c.l.b16 %v613
        %v619 = vunpack.c.l.b16 %v614
        %v620 = vpack.c.b16 %v619, %v618
        %vm621 = vcmask 130048
        %v623 = vsel %vm621, %v620, 0
        %625 = vmatprep.subr.bf16.mxu0 0
        %626 = vmatpush1.bf16.msra.mxu0 %v615
        %627 = vmatprep.subr.bf16.mxu0 0
        %628 = vmatpush1.bf16.msra.mxu0 0
        %629 = vmatprep.subr.bf16.mxu0 0
        %630 = vmatpush1.bf16.msra.mxu0 0
        %631 = vmatprep.subr.bf16.mxu0 0
        %632 = vmatpush1.bf16.msra.mxu0 0
        %633 = vmatprep.subr.bf16.mxu0 0
        %634 = vmatpush1.bf16.msra.mxu0 0
        %635 = vmatprep.subr.bf16.mxu0 0
        %636 = vmatpush1.bf16.msra.mxu0 0
        %637 = vmatprep.subr.bf16.mxu0 0
        %638 = vmatpush1.bf16.msra.mxu0 0
        %639 = vmatprep.subr.bf16.mxu0 0
        %640 = vmatpush1.bf16.msra.mxu0 0
        %641 = vmatprep.subr.bf16.mxu0 0
        %642 = vmatpush1.bf16.msra.mxu0 0
        %643 = vmatprep.subr.bf16.mxu0 0
        %644 = vmatpush1.bf16.msra.mxu0 0
        %645 = vmatprep.subr.bf16.mxu0 0
        %646 = vmatpush1.bf16.msra.mxu0 0
        %647 = vmatprep.subr.bf16.mxu0 0
        %648 = vmatpush1.bf16.msra.mxu0 0
        %649 = vmatprep.subr.bf16.mxu0 0
        %650 = vmatpush1.bf16.msra.mxu0 0
        %651 = vmatprep.subr.bf16.mxu0 0
        %652 = vmatpush1.bf16.msra.mxu0 0
        %653 = vmatprep.subr.bf16.mxu0 0
        %654 = vmatpush1.bf16.msra.mxu0 0
        %655 = vmatprep.subr.bf16.mxu0 0
        %656 = vmatpush1.bf16.msra.mxu0 0
        %657 = vmatprep.mubr.bf16.mxu0 0
        %658 = vmatmul.mubr.bf16.gmra.mrb[0].mxu0 %v623
        %v659 = vpop.f32.mrb[0].mxu0
        %v660 = vadd.f32 0.0, %v659
        %v661 = vpop.f32.mrb[0].mxu0
        %v662 = vpop.f32.mrb[0].mxu0
        %v663 = vadd.f32 0.0, %v662
        %v664 = vpop.f32.mrb[0].mxu0
        %665 = vdwg.mxu0
        %v666 = vadd.f32 %v611, %v660
        %v667 = vadd.f32 %v612, %v663
        %668 = vst [vmem:[#allocation3] sm:$0xff] %v666
        %669 = vst [vmem:[#allocation3 + $0x8] sm:$0xff] %v667
        %p670 = scmp.eq.s32.totalorder %s29, 3
        // Predicated region
        $region65: #{tpu_custom_call.1} parent=43 // pred_check
          %p671 = pneg %p670
        $region66: #{tpu_custom_call.1} parent=43 // pred_check_branch
          %673 = sbr.rel (%p671) target = $region68
        $region67: #{tpu_custom_call.1} parent=43 // pred_region
          %v674 = vld [vmem:[#allocation3] sm:$0xff]
          %v675 = vld [vmem:[#allocation3 + $0x8] sm:$0xff]
          %v676 = vld [vmem:[%s5] sm:$0xff]
          %v677 = vld [vmem:[%s5 + $0x8] sm:$0xff]
          %679 = vset.pattern.permute.xlu0 0
          %680 = vperm.xlu0 %679, %v676
          %v681 = vpop.permute.xlu0 %680
          %684 = vset.pattern.permute.xlu0 0
          %685 = vperm.xlu0 %684, %v677
          %v686 = vpop.permute.xlu0 %685
          %v688 = vmul.f32 %v674, %v681
          %v689 = vmul.f32 %v675, %v686
          %v690 = vld [vmem:[#allocation4] sm:$0xff]
          %v691 = vld [vmem:[#allocation4 + $0x8] sm:$0xff]
          %v692 = vadd.f32 %v688, %v690
          %v693 = vadd.f32 %v689, %v691
          // Predicated region
          $region69: #{tpu_custom_call.1} parent=67 // pred_check
            %p694 = pneg %p370
          $region70: #{tpu_custom_call.1} parent=67 // pred_check_branch
            %696 = sbr.rel (%p694) target = $region72
          $region71: #{tpu_custom_call.1} parent=67 // pred_region
            %v697 = vmax.f32 %v692, 0.0
            %v698 = vmax.f32 %v693, 0.0
            %v699 = vpack.c.bf16 %v698, %v697
            %700 = vst [vmem:[#allocation2] sm:$0xff] %v699
          $region72: #{tpu_custom_call.1} parent=67 // pred_fallthru
            _
          %p701 = scmp.eq.s32.totalorder %s28, 1
          // Predicated region
          $region73: #{tpu_custom_call.1} parent=67 // pred_check
            %p702 = pneg %p701
          $region74: #{tpu_custom_call.1} parent=67 // pred_check_branch
            %704 = sbr.rel (%p702) target = $region76
          $region75: #{tpu_custom_call.1} parent=67 // pred_region
            %705 = vst [vmem:[#allocation11] sm:$0xff] %v692
            %706 = vst [vmem:[#allocation11 + $0x8] sm:$0xff] %v693
          $region76: #{tpu_custom_call.1} parent=67 // pred_fallthru
            _
        $region68: #{tpu_custom_call.1} parent=43 // pred_fallthru
          _
        // Predicated region
        $region77: #{tpu_custom_call.1} parent=43 // pred_check
          %p707 = pneg %p199
        $region78: #{tpu_custom_call.1} parent=43 // pred_check_branch
          %709 = sbr.rel (%p707) target = $region80
        $region79: #{tpu_custom_call.1} parent=43 // pred_region
          %s711 = ssub.s32 256, 256
          %712 = vsyncadd [#allocation7], %s711
          %s713 = sshll.u32 [#allocation11], 4
          %s714 = int_to_ptr.vmem [resolvable:$true] %s713
          %719 = dma.vmem_to_hbm [thread:$0]  %s714, 256, %s6, [#allocation7], 128, 128, 8
        $region80: #{tpu_custom_call.1} parent=43 // pred_fallthru
          _
        // Predicated region
        $region81: #{tpu_custom_call.1} parent=43 // pred_check
          %p720 = pneg %p199
        $region82: #{tpu_custom_call.1} parent=43 // pred_check_branch
          %722 = sbr.rel (%p720) target = $region84
        $region83: #{tpu_custom_call.1} parent=43 // pred_region
          %723 = dma.done [#allocation7], 256
        $region84: #{tpu_custom_call.1} parent=43 // pred_fallthru
          _
      $region44: #{tpu_custom_call.1} parent=5 // pred_fallthru
        _
      %p724 = scmp.le.s32.totalorder 2, %s19
      // Predicated region
      $region85: #{tpu_custom_call.1} parent=5 // pred_check
        %p725 = pneg %p724
      $region86: #{tpu_custom_call.1} parent=5 // pred_check_branch
        %727 = sbr.rel (%p725) target = $region88
      $region87: #{tpu_custom_call.1} parent=5 // pred_region
        %s728 = ssub.s32 %s19, 2
      $region88: #{tpu_custom_call.1} parent=5 // pred_fallthru
        _
    $region6: #{tpu_custom_call.1} parent=1 // loop_footer
      %s23 = sadd.s32 1, %s19
    $region7: #{tpu_custom_call.1} parent=1 // loop_footer_branch
      %18 = sbr.rel target = $region3
    $region8: #{tpu_custom_call.1} parent=1 // loop_exit
      _
    %729 = vsyncpa [#allocation6], 1
    %s730 = scalar_lea.sflag [#allocation6], 1
    %731 = vsyncpa %s730, 1
    %732 = vsyncpa [#allocation9], 1
    %s733 = scalar_lea.sflag [#allocation9], 1
    %734 = vsyncpa %s733, 1
    %735 = vsyncpa [#allocation7], 1
    %s736 = scalar_lea.sflag [#allocation7], 1
    %737 = vsyncpa %s736, 1

</llo_original>
